<compile_context>
chip_gen: v7x
topology: tpu7x:2x2x1
jax: 0.10.0
libtpu: 0.0.40
codegen_flags: <defaults>
</compile_context>

<pallas_src>
import functools

import jax
import jax.numpy as jnp
from jax.experimental import pallas as pl
from jax.experimental.pallas import tpu as pltpu

LANES = 128          # lane width / padded output-channel count for conv kernels
EPS = 1e-5           # nn.BatchNorm2d default eps
LEAKY_SLOPE = 0.1    # activation_layer(..., alpha=0.1)
NUM_CHARS = 28

# (in_channels, out_channels, stride, skip_conv) for rb1..rb9
BLOCK_CFG = (
    (3, 16, 1, True),
    (16, 16, 2, True),
    (16, 16, 1, False),
    (16, 32, 2, True),
    (32, 32, 1, False),
    (32, 64, 2, True),
    (64, 64, 1, True),
    (64, 64, 1, False),
    (64, 64, 1, False),
)


# --------------------------------------------------------------------------- helpers
def _round_up(x, m):
    return (x + m - 1) // m * m


def _sigmoid(x):
    return 1.0 / (1.0 + jnp.exp(-x))


def _has_shortcut(cin, cout, stride, skip_conv):
    return skip_conv and (stride != 1 or cin != cout)


def _im2col(x_p, kH, kW, stride, padding, OH, OW):
    """x_p: (N, H, W, Cp) bf16 -> (N, OH, OW, kH*kW*Cp) bf16 (tap-major, channel-minor)."""
    xp = jnp.pad(x_p, ((0, 0), (padding, padding), (padding, padding), (0, 0)))
    cols = []
    for di in range(kH):
        for dj in range(kW):
            cols.append(xp[:, di:di + stride * OH:stride, dj:dj + stride * OW:stride, :])
    return jnp.concatenate(cols, axis=-1)


def _prep_weight(w_oihw, Cp):
    """(Cout, Cin, kH, kW) -> (kH*kW*Cp, 128) bf16, channels padded to Cp / lanes to 128."""
    Cout, Cin, kH, kW = w_oihw.shape
    wt = jnp.transpose(w_oihw, (2, 3, 1, 0))
    wt = jnp.pad(wt, ((0, 0), (0, 0), (0, Cp - Cin), (0, LANES - Cout)))
    return wt.reshape(kH * kW * Cp, LANES).astype(jnp.bfloat16)


# ------------------------------------------------- fused ConvBlock (conv+BN+sc+act)
@functools.lru_cache(maxsize=None)
def _build_convblock(NM, K, Csc, slope):
    """Fused kernel: (NM,K)bf16 @ (K,128)bf16 -> f32, batch-stats BN, optional fused
    1x1 shortcut dot, optional LeakyReLU, bf16 lane-dense store."""
    has_sc = Csc > 0
    inv_cnt = 1.0 / float(NM)

    def kernel(*refs):
        if has_sc:
            lhs_ref, w_ref, g_ref, b_ref, xs_ref, wsc_ref, o_ref = refs
        else:
            lhs_ref, w_ref, g_ref, b_ref, o_ref = refs
        # Convolution as one big-K MXU matmul (bf16 in, f32 accumulate).
        y = jnp.dot(lhs_ref[...], w_ref[...], preferred_element_type=jnp.float32)
        # BatchNorm batch statistics: VPU column reductions (off the MXU).
        mean = jnp.sum(y, axis=0, keepdims=True) * inv_cnt
        var = jnp.maximum(jnp.sum(y * y, axis=0, keepdims=True) * inv_cnt - mean * mean, 0.0)
        scale = g_ref[...] * jax.lax.rsqrt(var + EPS)
        shift = b_ref[...] - mean * scale        # shortcut bias pre-folded into b_ref
        o = y * scale + shift
        if has_sc:                               # fused 1x1 shortcut conv
            o = o + jnp.dot(xs_ref[...], wsc_ref[...], preferred_element_type=jnp.float32)
        if slope is not None:                    # LeakyReLU
            o = jnp.where(o >= 0.0, o, slope * o)
        o_ref[...] = o.astype(o_ref.dtype)

    n_in = 6 if has_sc else 4
    return pl.pallas_call(
        kernel,
        out_shape=jax.ShapeDtypeStruct((NM, LANES), jnp.bfloat16),
        in_specs=[pl.BlockSpec(memory_space=pltpu.MemorySpace.VMEM)] * n_in,
        out_specs=pl.BlockSpec(memory_space=pltpu.MemorySpace.VMEM),
        compiler_params=pltpu.CompilerParams(vmem_limit_bytes=32 * 1024 * 1024),
    )


def conv_block_pallas(x_p, w, gamma, beta, *, stride, padding, slope, shortcut=None):
    """Fused ConvBlock.  x_p: (N, H, W, Cp) bf16 with channels zero-padded to Cp.
    shortcut = (xs, wsc, bsc) with xs (N*OH*OW, Cp_in) bf16, wsc (Cp_in, 128) bf16.
    Returns ((N, OH, OW, 128) bf16, OH, OW).  Conv bias dropped (cancelled by BN)."""
    N, H, W, Cp = x_p.shape
    Cout, Cin, kH, kW = w.shape
    assert Cin <= Cp and Cout <= LANES
    OH = (H + 2 * padding - kH) // stride + 1
    OW = (W + 2 * padding - kW) // stride + 1
    NM = N * OH * OW

    lhs = _im2col(x_p, kH, kW, stride, padding, OH, OW).reshape(NM, kH * kW * Cp)
    wk = _prep_weight(w, Cp)
    g_p = jnp.pad(gamma.astype(jnp.float32), (0, LANES - Cout)).reshape(1, LANES)
    b_p = jnp.pad(beta.astype(jnp.float32), (0, LANES - Cout)).reshape(1, LANES)

    Csc = 0
    if shortcut is not None:
        xs, wsc, bsc = shortcut
        b_p = b_p + jnp.pad(bsc.astype(jnp.float32), (0, LANES - Cout)).reshape(1, LANES)
        Csc = xs.shape[-1]
        args = (lhs, wk, g_p, b_p, xs, wsc)
    else:
        args = (lhs, wk, g_p, b_p)

    out = _build_convblock(NM, kH * kW * Cp, Csc, slope)(*args)
    return out.reshape(N, OH, OW, LANES), OH, OW


def residual_block_pallas(x_p, p, *, stride, skip_conv, slope=LEAKY_SLOPE):
    N, H, W, Cp = x_p.shape
    Cout, Cin = p["w1"].shape[0], p["w1"].shape[1]

    a1, OH, OW = conv_block_pallas(x_p, p["w1"], p["g1"], p["be1"],
                                   stride=stride, padding=1, slope=slope)
    Cout_p = _round_up(Cout, 8)
    a1_p = a1[..., :Cout_p]                 # bf16; lanes >= Cout are exactly zero

    shortcut = None
    if _has_shortcut(Cin, Cout, stride, skip_conv):
        # 1x1 stride-s shortcut conv, fused into convb2's kernel.
        xs = x_p[:, ::stride, ::stride, :].reshape(N * OH * OW, Cp)
        wsc = jnp.pad(jnp.transpose(p["wsc"].reshape(Cout, Cin)),
                      ((0, Cp - Cin), (0, LANES - Cout))).astype(jnp.bfloat16)
        shortcut = (xs, wsc, p["bsc"])

    out, OH2, OW2 = conv_block_pallas(a1_p, p["w2"], p["g2"], p["be2"],
                                      stride=1, padding=1, slope=slope, shortcut=shortcut)
    # TODO(synk): nn.Dropout(p=0.2) is stochastic in training mode; identity here (eval).
    return out[..., :Cout_p], OH2, OW2


# ----------------------------------------------------------------------------- BiLSTM
@functools.lru_cache(maxsize=None)
def _build_bilstm(T, N, H):
    """grid=(2,) 'parallel' over directions (maps onto v7x's 2 TensorCores); only the
    recurrence h@Whh + gate math runs inside the serial loop (input proj is hoisted)."""

    def kernel(xg_ref, whh_ref, o_ref):
        d = pl.program_id(0)

        def step(t, carry):
            h, c = carry
            idx = jnp.where(d == 0, t, T - 1 - t)          # fwd: 0..T-1, bwd: T-1..0
            g = xg_ref[0, idx] + jnp.dot(h, whh_ref[0], preferred_element_type=jnp.float32)
            i = _sigmoid(g[:, 0 * H:1 * H])
            f = _sigmoid(g[:, 1 * H:2 * H])
            gg = jnp.tanh(g[:, 2 * H:3 * H])
            o = _sigmoid(g[:, 3 * H:4 * H])
            c_new = f * c + i * gg
            h_new = o * jnp.tanh(c_new)
            o_ref[0, idx] = h_new
            return (h_new, c_new)

        init = (jnp.zeros((N, H), jnp.float32), jnp.zeros((N, H), jnp.float32))
        jax.lax.fori_loop(0, T, step, init)

    return pl.pallas_call(
        kernel,
        out_shape=jax.ShapeDtypeStruct((2, T, N, H), jnp.float32),
        grid_spec=pltpu.PrefetchScalarGridSpec(
            num_scalar_prefetch=0, grid=(2,),
            in_specs=[pl.BlockSpec((1, T, N, 4 * H), lambda d: (d, 0, 0, 0)),
                      pl.BlockSpec((1, H, 4 * H), lambda d: (d, 0, 0))],
            out_specs=pl.BlockSpec((1, T, N, H), lambda d: (d, 0, 0, 0))),
        compiler_params=pltpu.CompilerParams(dimension_semantics=("parallel",)),
    )


def bilstm_pallas(x_tnc, fw, bw):
    T, N, C = x_tnc.shape
    H = fw["whh"].shape[1]
    x2 = x_tnc.reshape(T * N, C).astype(jnp.float32)

    def proj(p):   # hoisted input projection: one matmul for all timesteps + bias
        g = x2 @ jnp.transpose(p["wih"]).astype(jnp.float32) + (p["bih"] + p["bhh"])
        return g.reshape(T, N, 4 * H)

    xg = jnp.stack([proj(fw), proj(bw)], axis=0).astype(jnp.float32)           # (2,T,N,4H)
    whh = jnp.stack([jnp.transpose(fw["whh"]), jnp.transpose(bw["whh"])],
                    axis=0).astype(jnp.float32)                                 # (2,H,4H)
    out = _build_bilstm(T, N, H)(xg, whh)                                       # (2,T,N,H)
    h = jnp.concatenate([out[0], out[1]], axis=-1)                              # (T,N,2H)
    return jnp.transpose(h, (1, 0, 2))                                          # (N,T,2H)


# ----------------------------------------------------------- Linear + log_softmax head
@functools.lru_cache(maxsize=None)
def _build_head(M, D):
    def kernel(x_ref, w_ref, b_ref, o_ref):
        logits = jnp.dot(x_ref[...], w_ref[...], preferred_element_type=jnp.float32) + b_ref[...]
        m = jnp.max(logits, axis=-1, keepdims=True)
        lse = m + jnp.log(jnp.sum(jnp.exp(logits - m), axis=-1, keepdims=True))
        o_ref[...] = logits - lse

    return pl.pallas_call(
        kernel,
        out_shape=jax.ShapeDtypeStruct((M, LANES), jnp.float32),
        in_specs=[pl.BlockSpec(memory_space=pltpu.MemorySpace.VMEM)] * 3,
        out_specs=pl.BlockSpec(memory_space=pltpu.MemorySpace.VMEM),
    )


def head_pallas(h_ntc, w_out, b_out):
    N, T, D = h_ntc.shape
    ncls = w_out.shape[0]
    assert ncls <= LANES
    x2 = h_ntc.reshape(N * T, D).astype(jnp.float32)
    wp = jnp.pad(jnp.transpose(w_out), ((0, 0), (0, LANES - ncls))).astype(jnp.float32)
    # padded classes get a -1e30 bias so they contribute exp(...) == 0 to the softmax
    bp = jnp.full((1, LANES), -1e30, jnp.float32).at[0, :ncls].set(b_out.astype(jnp.float32))
    logp = _build_head(N * T, D)(x2, wp, bp)
    return logp[:, :ncls].reshape(N, T, ncls)


# ------------------------------------------------------------------------ full forward
def cnn_bilstm_forward(images, params):
    x = (images.astype(jnp.float32) * (1.0 / 255.0)).astype(jnp.bfloat16)
    cin = x.shape[-1]
    x = jnp.pad(x, ((0, 0), (0, 0), (0, 0), (0, _round_up(cin, 8) - cin)))
    Hf = Wf = None
    for cfg, bp in zip(BLOCK_CFG, params["blocks"]):
        _, _, stride, skip = cfg
        x, Hf, Wf = residual_block_pallas(x, bp, stride=stride, skip_conv=skip)
    N = x.shape[0]
    Cf = BLOCK_CFG[-1][1]
    x = x[..., :Cf]
    # PyTorch: NCHW tensor .reshape(N, -1, C) -> replicate the raw-memory reshape.
    seq = jnp.transpose(x, (0, 3, 1, 2)).reshape(N, Hf * Wf, Cf)
    seq_t = jnp.transpose(seq, (1, 0, 2))                      # (T, N, C) time-major
    h = bilstm_pallas(seq_t, params["lstm_fw"], params["lstm_bw"])   # (N, T, 256)
    # TODO(synk): lstm_dropout (p=0.2) is stochastic in training mode; identity here (eval).
    return head_pallas(h, params["w_out"], params["b_out"])


# ----------------------------------------------------------------- pure-JAX reference
def _leaky(x, slope=LEAKY_SLOPE):
    return jnp.where(x >= 0, x, slope * x)


def _conv_ref(x_nhwc, w, b, stride, padding):
    y = jax.lax.conv_general_dilated(
        x_nhwc.astype(jnp.bfloat16), w.astype(jnp.bfloat16),
        (stride, stride), [(padding, padding), (padding, padding)],
        dimension_numbers=("NHWC", "OIHW", "NHWC"),
        preferred_element_type=jnp.float32)
    if b is not None:
        y = y + b.reshape(1, 1, 1, -1)
    return y


def _bn_ref(y, gamma, beta):
    mean = jnp.mean(y, axis=(0, 1, 2), keepdims=True)
    var = jnp.mean(jnp.square(y - mean), axis=(0, 1, 2), keepdims=True)
    return ((y - mean) * jax.lax.rsqrt(var + EPS) * gamma.reshape(1, 1, 1, -1)
            + beta.reshape(1, 1, 1, -1))


def _residual_block_ref(x, p, stride, skip_conv, slope=LEAKY_SLOPE):
    cin = x.shape[-1]
    cout = p["w1"].shape[0]
    out = _leaky(_bn_ref(_conv_ref(x, p["w1"], p["b1"], stride, 1), p["g1"], p["be1"]), slope)
    out = _bn_ref(_conv_ref(out, p["w2"], p["b2"], 1, 1), p["g2"], p["be2"])
    if _has_shortcut(cin, cout, stride, skip_conv):
        out = out + _conv_ref(x, p["wsc"], p["bsc"], stride, 0)
    return _leaky(out, slope)


def _lstm_dir_ref(x_tnc, wih, whh, bih, bhh):
    H = whh.shape[1]
    N = x_tnc.shape[1]

    def step(carry, xt):
        h, c = carry
        g = xt @ wih.T + h @ whh.T + bih + bhh
        i = _sigmoid(g[:, 0:H])
        f = _sigmoid(g[:, H:2 * H])
        gg = jnp.tanh(g[:, 2 * H:3 * H])
        o = _sigmoid(g[:, 3 * H:4 * H])
        c = f * c + i * gg
        h = o * jnp.tanh(c)
        return (h, c), h

    init = (jnp.zeros((N, H), jnp.float32), jnp.zeros((N, H), jnp.float32))
    _, hs = jax.lax.scan(step, init, x_tnc)
    return hs


def cnn_bilstm_ref(images, params):
    x = images.astype(jnp.float32) / 255.0
    for cfg, bp in zip(BLOCK_CFG, params["blocks"]):
        _, _, stride, skip = cfg
        x = _residual_block_ref(x, bp, stride, skip)
    N, Hf, Wf, Cf = x.shape
    seq = jnp.transpose(x, (0, 3, 1, 2)).reshape(N, Hf * Wf, Cf)
    xt = jnp.transpose(seq, (1, 0, 2))
    fw, bw = params["lstm_fw"], params["lstm_bw"]
    hf = _lstm_dir_ref(xt, fw["wih"], fw["whh"], fw["bih"], fw["bhh"])
    hb = jnp.flip(_lstm_dir_ref(jnp.flip(xt, 0), bw["wih"], bw["whh"], bw["bih"], bw["bhh"]), 0)
    h = jnp.transpose(jnp.concatenate([hf, hb], -1), (1, 0, 2))
    logits = h @ params["w_out"].T + params["b_out"]
    return jax.nn.log_softmax(logits, axis=-1)


# ---------------------------------------------------------------------------- params
class _KeyGen:
    def __init__(self, key):
        self.key = key

    def __call__(self):
        self.key, sub = jax.random.split(self.key)
        return sub


def _init_params(key, num_chars):
    kg = _KeyGen(key)

    def conv_w(cout, cin, k):
        return 0.1 * jax.random.normal(kg(), (cout, cin, k, k), jnp.float32)

    def vec(c, scale=0.1):
        return scale * jax.random.normal(kg(), (c,), jnp.float32)

    blocks = []
    for (cin, cout, stride, skip) in BLOCK_CFG:
        p = {"w1": conv_w(cout, cin, 3), "b1": vec(cout),
             "g1": 1.0 + vec(cout), "be1": vec(cout),
             "w2": conv_w(cout, cout, 3), "b2": vec(cout),
             "g2": 1.0 + vec(cout), "be2": vec(cout)}
        if _has_shortcut(cin, cout, stride, skip):
            p["wsc"] = conv_w(cout, cin, 1)
            p["bsc"] = vec(cout)
        blocks.append(p)

    def lstm_dir():
        return {"wih": 0.1 * jax.random.normal(kg(), (512, 64), jnp.float32),
                "whh": 0.1 * jax.random.normal(kg(), (512, 128), jnp.float32),
                "bih": vec(512), "bhh": vec(512)}

    return {"blocks": blocks,
            "lstm_fw": lstm_dir(),
            "lstm_bw": lstm_dir(),
            "w_out": 0.1 * jax.random.normal(kg(), (num_chars + 1, 256), jnp.float32),
            "b_out": vec(num_chars + 1)}


# ------------------------------------------------------------------------------ main
if __name__ == "__main__":
    master = jax.random.PRNGKey(0)
    k_img, k_unit, k_par = jax.random.split(master, 3)

    # --- unit check: fused Conv2d + BatchNorm2d (ConvBlock) vs XLA reference ---
    ku = jax.random.split(k_unit, 5)
    xu = jax.random.normal(ku[0], (2, 16, 32, 16), jnp.float32)
    wu = 0.1 * jax.random.normal(ku[1], (32, 16, 3, 3), jnp.float32)
    bu = 0.1 * jax.random.normal(ku[2], (32,), jnp.float32)
    gu = 1.0 + 0.1 * jax.random.normal(ku[3], (32,), jnp.float32)
    beu = 0.1 * jax.random.normal(ku[4], (32,), jnp.float32)
    out_p, OHu, OWu = conv_block_pallas(xu.astype(jnp.bfloat16), wu, gu, beu,
                                        stride=2, padding=1, slope=None)
    out_p = jax.block_until_ready(out_p[..., :32].astype(jnp.float32))
    out_r = _bn_ref(_conv_ref(xu, wu, bu, 2, 1), gu, beu)   # bias in ref: cancelled by BN
    assert out_p.shape == out_r.shape
    assert jnp.allclose(out_p, out_r, atol=1e-2, rtol=1e-2), "ConvBlock kernel mismatch"

    # --- full CNNBILSTM forward (entire forward under one jit) ---
    images = jax.random.uniform(k_img, (2, 32, 64, 3), jnp.float32, 0.0, 255.0)
    params = _init_params(k_par, NUM_CHARS)

    forward = jax.jit(cnn_bilstm_forward)
    out = jax.block_until_ready(forward(images, params))
    assert out.shape == (2, 32, NUM_CHARS + 1)
    assert bool(jnp.all(jnp.isfinite(out)))
    assert jnp.allclose(jnp.sum(jnp.exp(out), axis=-1), 1.0, atol=1e-3)

    ref = jax.block_until_ready(jax.jit(cnn_bilstm_ref)(images, params))
    max_err = float(jnp.max(jnp.abs(out - ref)))
    assert max_err < 5e-2, f"full-model mismatch vs reference: max abs err {max_err:.4f}"

    print("KERNEL_OK")
</pallas_src>

<mosaic_0001>
module attributes {stable_mosaic.version = 11 : i64} {
  func.func @kernel(%arg0: memref<256x144xbf16, #tpu.memory_space<vmem>>, %arg1: memref<144x128xbf16, #tpu.memory_space<vmem>>, %arg2: memref<1x128xf32, #tpu.memory_space<vmem>>, %arg3: memref<1x128xf32, #tpu.memory_space<vmem>>, %arg4: memref<256x128xbf16, #tpu.memory_space<vmem>>) attributes {dimension_semantics = [], scalar_prefetch = 0 : i64, scratch_operands = 0 : i64, tpu.core_type = #tpu.core_type<tc>} {
    %c0 = arith.constant 0 : index
    %c0_0 = arith.constant 0 : index
    %0 = vector.load %arg0[%c0, %c0_0] : memref<256x144xbf16, #tpu.memory_space<vmem>>, vector<256x144xbf16>
    %c0_1 = arith.constant 0 : index
    %c0_2 = arith.constant 0 : index
    %1 = vector.load %arg1[%c0_1, %c0_2] : memref<144x128xbf16, #tpu.memory_space<vmem>>, vector<144x128xbf16>
    %cst = arith.constant dense<0.000000e+00> : vector<256x128xf32>
    %2 = tpu.matmul %0, %1, %cst {dimension_numbers = #tpu.dot_dimension_numbers<[1], [0], [0], [1], [0, 0, 1, 1], [], []>} : vector<256x144xbf16>, vector<144x128xbf16>, vector<256x128xf32> -> vector<256x128xf32>
    %cst_3 = arith.constant dense<0.000000e+00> : vector<128xf32>
    %3 = vector.multi_reduction <add>, %2, %cst_3 [0] : vector<256x128xf32> to vector<128xf32>
    %4 = vector.shape_cast %3 : vector<128xf32> to vector<1x128xf32>
    %cst_4 = arith.constant 3.906250e-03 : f32
    %5 = vector.broadcast %cst_4 : f32 to vector<1x128xf32>
    %6 = arith.mulf %4, %5 : vector<1x128xf32>
    %7 = arith.mulf %2, %2 : vector<256x128xf32>
    %cst_5 = arith.constant dense<0.000000e+00> : vector<128xf32>
    %8 = vector.multi_reduction <add>, %7, %cst_5 [0] : vector<256x128xf32> to vector<128xf32>
    %9 = vector.shape_cast %8 : vector<128xf32> to vector<1x128xf32>
    %cst_6 = arith.constant 3.906250e-03 : f32
    %10 = vector.broadcast %cst_6 : f32 to vector<1x128xf32>
    %11 = arith.mulf %9, %10 : vector<1x128xf32>
    %12 = arith.mulf %6, %6 : vector<1x128xf32>
    %13 = arith.subf %11, %12 : vector<1x128xf32>
    %cst_7 = arith.constant 0.000000e+00 : f32
    %14 = vector.broadcast %cst_7 : f32 to vector<1x128xf32>
    %15 = arith.maximumf %13, %14 : vector<1x128xf32>
    %c0_8 = arith.constant 0 : index
    %c0_9 = arith.constant 0 : index
    %16 = vector.load %arg2[%c0_8, %c0_9] : memref<1x128xf32, #tpu.memory_space<vmem>>, vector<1x128xf32>
    %cst_10 = arith.constant 9.99999974E-6 : f32
    %17 = vector.broadcast %cst_10 : f32 to vector<1x128xf32>
    %18 = arith.addf %15, %17 : vector<1x128xf32>
    %19 = math.rsqrt %18 : vector<1x128xf32>
    %20 = arith.mulf %16, %19 : vector<1x128xf32>
    %c0_11 = arith.constant 0 : index
    %c0_12 = arith.constant 0 : index
    %21 = vector.load %arg3[%c0_11, %c0_12] : memref<1x128xf32, #tpu.memory_space<vmem>>, vector<1x128xf32>
    %22 = arith.mulf %6, %20 : vector<1x128xf32>
    %23 = arith.subf %21, %22 : vector<1x128xf32>
    %24 = vector.broadcast %20 : vector<1x128xf32> to vector<256x128xf32>
    %25 = arith.mulf %2, %24 : vector<256x128xf32>
    %26 = vector.broadcast %23 : vector<1x128xf32> to vector<256x128xf32>
    %27 = arith.addf %25, %26 : vector<256x128xf32>
    %28 = arith.truncf %27 : vector<256x128xf32> to vector<256x128xbf16>
    %c0_13 = arith.constant 0 : index
    %c0_14 = arith.constant 0 : index
    %29 = vector.load %arg4[%c0_13, %c0_14] : memref<256x128xbf16, #tpu.memory_space<vmem>>, vector<256x128xbf16>
    tpu.vector_store %arg4[%c0_13, %c0_14], %28 {strides = array<i32>} : memref<256x128xbf16, #tpu.memory_space<vmem>>, vector<256x128xbf16>,
    return
  }
}

</mosaic_0001>

<llo_original>
// kernel: tpu_custom_call.1
$region0: #{tpu_custom_call.1}
  #allocation0 [shape = 'u32[]', space=smem, size = 0x4, offset = 0x4, fixed_abs, tag = 'smem constant byte address 0x4 - core index']
  #allocation1 [shape = 'u32[144,128]{1,0:T(1,128)}', space=vmem, size = 0x12000, scoped, tag = 'internal scratch']
  %s0 = inlined_call_operand.vmem [shape: bf16[256,144], index: 0, kind: input, shape index: {}]
  %s1 = inlined_call_operand.vmem [shape: bf16[144,128], index: 1, kind: input, shape index: {}]
  %s2 = inlined_call_operand.vmem [shape: f32[1,128], index: 2, kind: input, shape index: {}]
  %s3 = inlined_call_operand.vmem [shape: f32[1,128], index: 3, kind: input, shape index: {}]
  %s4 = inlined_call_operand.hbm [shape: bf16[256,128], index: 4, kind: output, shape index: {}]
  %s5 = sld [smem:[#allocation0]]
  $region26: #{tpu_custom_call.1} parent=0
    _
  %s7 = ssub.s32 1, %s5
  %s8 = scalar_select 0, %s7, %s5
  $region1: #{tpu_custom_call.1} parent=0
    #allocation2 [shape = 'u8[65536]{0}', space=vmem, size = 0x10000, scoped, tag = 'output window, operand 0, single buffered']
    #allocation3 [shape = 's32[1]{0}', space=sflag, size = 0x4, scoped, tag = 'scoped memory for tpu_custom_call.1']
    %9 = vsyncpa [#allocation3], 0
    // Predicated region
    $region2: #{tpu_custom_call.1} parent=1 // pred_check
      _
    $region3: #{tpu_custom_call.1} parent=1 // pred_check_branch
      %11 = sbr.rel (0) target = $region5
    $region4: #{tpu_custom_call.1} parent=1 // pred_region
      _
    $region5: #{tpu_custom_call.1} parent=1 // pred_fallthru
      _
    // Predicated region
    $region6: #{tpu_custom_call.1} parent=1 // pred_check
      _
    $region7: #{tpu_custom_call.1} parent=1 // pred_check_branch
      %13 = sbr.rel (0) target = $region9
    $region8: #{tpu_custom_call.1} parent=1 // pred_region
      _
    $region9: #{tpu_custom_call.1} parent=1 // pred_fallthru
      _
    // Predicated region
    $region10: #{tpu_custom_call.1} parent=1 // pred_check
      _
    $region11: #{tpu_custom_call.1} parent=1 // pred_check_branch
      %15 = sbr.rel (0) target = $region13
    $region12: #{tpu_custom_call.1} parent=1 // pred_region
      _
    $region13: #{tpu_custom_call.1} parent=1 // pred_fallthru
      _
    // Predicated region
    $region14: #{tpu_custom_call.1} parent=1 // pred_check
      _
    $region15: #{tpu_custom_call.1} parent=1 // pred_check_branch
      %17 = sbr.rel (0) target = $region17
    $region16: #{tpu_custom_call.1} parent=1 // pred_region
      _
    $region17: #{tpu_custom_call.1} parent=1 // pred_fallthru
      _
    %v19 = vld [vmem:[%s0] sm:$0xff]
    %v20 = vld [vmem:[%s0 + $0x8] sm:$0xff]
    %v21 = vld [vmem:[%s0 + $0x10] sm:$0xff]
    %v22 = vld [vmem:[%s0 + $0x18] sm:$0xff]
    %v23 = vld [vmem:[%s0 + $0x20] sm:$0xff]
    %v24 = vld [vmem:[%s0 + $0x28] sm:$0xff]
    %v25 = vld [vmem:[%s0 + $0x30] sm:$0xff]
    %v26 = vld [vmem:[%s0 + $0x38] sm:$0xff]
    %v27 = vld [vmem:[%s0 + $0x40] sm:$0xff]
    %v28 = vld [vmem:[%s0 + $0x48] sm:$0xff]
    %v29 = vld [vmem:[%s0 + $0x50] sm:$0xff]
    %v30 = vld [vmem:[%s0 + $0x58] sm:$0xff]
    %v31 = vld [vmem:[%s0 + $0x60] sm:$0xff]
    %v32 = vld [vmem:[%s0 + $0x68] sm:$0xff]
    %v33 = vld [vmem:[%s0 + $0x70] sm:$0xff]
    %v34 = vld [vmem:[%s0 + $0x78] sm:$0xff]
    %v35 = vld [vmem:[%s0 + $0x80] sm:$0xff]
    %v36 = vld [vmem:[%s0 + $0x88] sm:$0xff]
    %v37 = vld [vmem:[%s0 + $0x90] sm:$0xff]
    %v38 = vld [vmem:[%s0 + $0x98] sm:$0xff]
    %v39 = vld [vmem:[%s0 + $0xa0] sm:$0xff]
    %v40 = vld [vmem:[%s0 + $0xa8] sm:$0xff]
    %v41 = vld [vmem:[%s0 + $0xb0] sm:$0xff]
    %v42 = vld [vmem:[%s0 + $0xb8] sm:$0xff]
    %v43 = vld [vmem:[%s0 + $0xc0] sm:$0xff]
    %v44 = vld [vmem:[%s0 + $0xc8] sm:$0xff]
    %v45 = vld [vmem:[%s0 + $0xd0] sm:$0xff]
    %v46 = vld [vmem:[%s0 + $0xd8] sm:$0xff]
    %v47 = vld [vmem:[%s0 + $0xe0] sm:$0xff]
    %v48 = vld [vmem:[%s0 + $0xe8] sm:$0xff]
    %v49 = vld [vmem:[%s0 + $0xf0] sm:$0xff]
    %v50 = vld [vmem:[%s0 + $0xf8] sm:$0xff]
    %v51 = vld [vmem:[%s1] sm:$0xf]
    %v52 = vld [vmem:[%s1 + $0x4] sm:$0xf]
    %v53 = vld [vmem:[%s1 + $0x8] sm:$0xf]
    %v54 = vld [vmem:[%s1 + $0xc] sm:$0xf]
    %v55 = vld [vmem:[%s1 + $0x10] sm:$0xf]
    %v56 = vld [vmem:[%s1 + $0x14] sm:$0xf]
    %v57 = vld [vmem:[%s1 + $0x18] sm:$0xf]
    %v58 = vld [vmem:[%s1 + $0x1c] sm:$0xf]
    %v59 = vld [vmem:[%s1 + $0x20] sm:$0xf]
    %v60 = vld [vmem:[%s1 + $0x24] sm:$0xf]
    %v61 = vld [vmem:[%s1 + $0x28] sm:$0xf]
    %v62 = vld [vmem:[%s1 + $0x2c] sm:$0xf]
    %v63 = vld [vmem:[%s1 + $0x30] sm:$0xf]
    %v64 = vld [vmem:[%s1 + $0x34] sm:$0xf]
    %v65 = vld [vmem:[%s1 + $0x38] sm:$0xf]
    %v66 = vld [vmem:[%s1 + $0x3c] sm:$0xf]
    %v67 = vld [vmem:[%s1 + $0x40] sm:$0xf]
    %v68 = vld [vmem:[%s1 + $0x44] sm:$0xf]
    %v101 = vunpack.c.l.b16 %v19
    %v102 = vunpack.c.h.b16 %v19
    %v103 = vunpack.c.l.b16 %v20
    %v104 = vunpack.c.h.b16 %v20
    %v105 = vunpack.c.l.b16 %v21
    %v106 = vunpack.c.h.b16 %v21
    %v107 = vunpack.c.l.b16 %v22
    %v108 = vunpack.c.h.b16 %v22
    %v109 = vunpack.c.l.b16 %v23
    %v110 = vunpack.c.h.b16 %v23
    %v111 = vunpack.c.l.b16 %v24
    %v112 = vunpack.c.h.b16 %v24
    %v113 = vunpack.c.l.b16 %v25
    %v114 = vunpack.c.h.b16 %v25
    %v115 = vunpack.c.l.b16 %v26
    %v116 = vunpack.c.h.b16 %v26
    %v117 = vunpack.c.l.b16 %v27
    %v118 = vunpack.c.h.b16 %v27
    %v119 = vunpack.c.l.b16 %v28
    %v120 = vunpack.c.h.b16 %v28
    %v121 = vunpack.c.l.b16 %v29
    %v122 = vunpack.c.h.b16 %v29
    %v123 = vunpack.c.l.b16 %v30
    %v124 = vunpack.c.h.b16 %v30
    %v125 = vunpack.c.l.b16 %v31
    %v126 = vunpack.c.h.b16 %v31
    %v127 = vunpack.c.l.b16 %v32
    %v128 = vunpack.c.h.b16 %v32
    %v129 = vunpack.c.l.b16 %v33
    %v130 = vunpack.c.h.b16 %v33
    %v131 = vunpack.c.l.b16 %v34
    %v132 = vunpack.c.h.b16 %v34
    %v133 = vunpack.c.l.b16 %v35
    %v134 = vunpack.c.h.b16 %v35
    %v135 = vunpack.c.l.b16 %v36
    %v136 = vunpack.c.h.b16 %v36
    %v137 = vunpack.c.l.b16 %v37
    %v138 = vunpack.c.h.b16 %v37
    %v139 = vunpack.c.l.b16 %v38
    %v140 = vunpack.c.h.b16 %v38
    %v141 = vunpack.c.l.b16 %v39
    %v142 = vunpack.c.h.b16 %v39
    %v143 = vunpack.c.l.b16 %v40
    %v144 = vunpack.c.h.b16 %v40
    %v145 = vunpack.c.l.b16 %v41
    %v146 = vunpack.c.h.b16 %v41
    %v147 = vunpack.c.l.b16 %v42
    %v148 = vunpack.c.h.b16 %v42
    %v149 = vunpack.c.l.b16 %v43
    %v150 = vunpack.c.h.b16 %v43
    %v151 = vunpack.c.l.b16 %v44
    %v152 = vunpack.c.h.b16 %v44
    %v153 = vunpack.c.l.b16 %v45
    %v154 = vunpack.c.h.b16 %v45
    %v155 = vunpack.c.l.b16 %v46
    %v156 = vunpack.c.h.b16 %v46
    %v157 = vunpack.c.l.b16 %v47
    %v158 = vunpack.c.h.b16 %v47
    %v159 = vunpack.c.l.b16 %v48
    %v160 = vunpack.c.h.b16 %v48
    %v161 = vunpack.c.l.b16 %v49
    %v162 = vunpack.c.h.b16 %v49
    %v163 = vunpack.c.l.b16 %v50
    %v164 = vunpack.c.h.b16 %v50
    %v165 = vpack.c.b16 %v103, %v101
    %v166 = vpack.c.b16 %v104, %v102
    %v167 = vpack.c.b16 %v107, %v105
    %v168 = vpack.c.b16 %v108, %v106
    %v169 = vpack.c.b16 %v111, %v109
    %v170 = vpack.c.b16 %v112, %v110
    %v171 = vpack.c.b16 %v115, %v113
    %v172 = vpack.c.b16 %v116, %v114
    %v173 = vpack.c.b16 %v119, %v117
    %v174 = vpack.c.b16 %v120, %v118
    %v175 = vpack.c.b16 %v123, %v121
    %v176 = vpack.c.b16 %v124, %v122
    %v177 = vpack.c.b16 %v127, %v125
    %v178 = vpack.c.b16 %v128, %v126
    %v179 = vpack.c.b16 %v131, %v129
    %v180 = vpack.c.b16 %v132, %v130
    %v181 = vpack.c.b16 %v135, %v133
    %v182 = vpack.c.b16 %v136, %v134
    %v183 = vpack.c.b16 %v139, %v137
    %v184 = vpack.c.b16 %v140, %v138
    %v185 = vpack.c.b16 %v143, %v141
    %v186 = vpack.c.b16 %v144, %v142
    %v187 = vpack.c.b16 %v147, %v145
    %v188 = vpack.c.b16 %v148, %v146
    %v189 = vpack.c.b16 %v151, %v149
    %v190 = vpack.c.b16 %v152, %v150
    %v191 = vpack.c.b16 %v155, %v153
    %v192 = vpack.c.b16 %v156, %v154
    %v193 = vpack.c.b16 %v159, %v157
    %v194 = vpack.c.b16 %v160, %v158
    %v195 = vpack.c.b16 %v163, %v161
    %v196 = vpack.c.b16 %v164, %v162
    %v231 = vunpack.c.l.b16 %v51
    %v232 = vunpack.c.l.b16 %v52
    %v233 = vunpack.c.l.b16 %v53
    %v234 = vunpack.c.l.b16 %v54
    %v235 = vunpack.c.l.b16 %v55
    %v236 = vunpack.c.l.b16 %v56
    %v237 = vunpack.c.l.b16 %v57
    %v238 = vunpack.c.l.b16 %v58
    %v239 = vunpack.c.l.b16 %v59
    %v240 = vunpack.c.l.b16 %v60
    %v241 = vunpack.c.l.b16 %v61
    %v242 = vunpack.c.l.b16 %v62
    %v243 = vunpack.c.l.b16 %v63
    %v244 = vunpack.c.l.b16 %v64
    %v245 = vunpack.c.l.b16 %v65
    %v246 = vunpack.c.l.b16 %v66
    %v247 = vunpack.c.l.b16 %v67
    %v248 = vunpack.c.l.b16 %v68
    %v249 = vpack.c.b16 %v232, %v231
    %v250 = vpack.c.b16 %v234, %v233
    %v251 = vpack.c.b16 %v236, %v235
    %v252 = vpack.c.b16 %v238, %v237
    %v253 = vpack.c.b16 %v240, %v239
    %v254 = vpack.c.b16 %v242, %v241
    %v255 = vpack.c.b16 %v244, %v243
    %v256 = vpack.c.b16 %v246, %v245
    %v257 = vpack.c.b16 %v248, %v247
    %vm267 = vcmask 130048
    %v269 = vsel %vm267, %v166, 0
    %v272 = vsel %vm267, %v168, 0
    %v275 = vsel %vm267, %v170, 0
    %v278 = vsel %vm267, %v172, 0
    %v281 = vsel %vm267, %v174, 0
    %v284 = vsel %vm267, %v176, 0
    %v287 = vsel %vm267, %v178, 0
    %v290 = vsel %vm267, %v180, 0
    %v293 = vsel %vm267, %v182, 0
    %v296 = vsel %vm267, %v184, 0
    %v299 = vsel %vm267, %v186, 0
    %v302 = vsel %vm267, %v188, 0
    %v305 = vsel %vm267, %v190, 0
    %v308 = vsel %vm267, %v192, 0
    %v311 = vsel %vm267, %v194, 0
    %v314 = vsel %vm267, %v196, 0
    %316 = vmatprep.subr.bf16.mxu0 0
    %317 = vmatpush1.bf16.msra.mxu0 %v249
    %318 = vmatprep.subr.bf16.mxu0 0
    %319 = vmatpush1.bf16.msra.mxu0 %v250
    %320 = vmatprep.subr.bf16.mxu0 0
    %321 = vmatpush1.bf16.msra.mxu0 %v251
    %322 = vmatprep.subr.bf16.mxu0 0
    %323 = vmatpush1.bf16.msra.mxu0 %v252
    %324 = vmatprep.subr.bf16.mxu0 0
    %325 = vmatpush1.bf16.msra.mxu0 %v253
    %326 = vmatprep.subr.bf16.mxu0 0
    %327 = vmatpush1.bf16.msra.mxu0 %v254
    %328 = vmatprep.subr.bf16.mxu0 0
    %329 = vmatpush1.bf16.msra.mxu0 %v255
    %330 = vmatprep.subr.bf16.mxu0 0
    %331 = vmatpush1.bf16.msra.mxu0 %v256
    %332 = vmatprep.subr.bf16.mxu0 0
    %333 = vmatpush1.bf16.msra.mxu0 %v257
    %334 = vmatprep.subr.bf16.mxu0 0
    %335 = vmatpush1.bf16.msra.mxu0 0
    %336 = vmatprep.subr.bf16.mxu0 0
    %337 = vmatpush1.bf16.msra.mxu0 0
    %338 = vmatprep.subr.bf16.mxu0 0
    %339 = vmatpush1.bf16.msra.mxu0 0
    %340 = vmatprep.subr.bf16.mxu0 0
    %341 = vmatpush1.bf16.msra.mxu0 0
    %342 = vmatprep.subr.bf16.mxu0 0
    %343 = vmatpush1.bf16.msra.mxu0 0
    %344 = vmatprep.subr.bf16.mxu0 0
    %345 = vmatpush1.bf16.msra.mxu0 0
    %346 = vmatprep.subr.bf16.mxu0 0
    %347 = vmatpush1.bf16.msra.mxu0 0
    %348 = vmatprep.mubr.bf16.mxu0 %v269
    %349 = vmatmul.mubr.bf16.gmra.mrb[0].mxu0 %v165
    %v350 = vpop.f32.mrb[0].mxu0
    %v351 = vadd.f32 0.0, %v350
    %v352 = vpop.f32.mrb[0].mxu0
    %v353 = vpop.f32.mrb[0].mxu0
    %v354 = vadd.f32 0.0, %v353
    %v355 = vpop.f32.mrb[0].mxu0
    %356 = vmatprep.mubr.bf16.mxu0 %v272
    %357 = vmatmul.mubr.bf16.gmra.mrb[0].mxu0 %v167
    %v358 = vpop.f32.mrb[0].mxu0
    %v359 = vadd.f32 0.0, %v358
    %v360 = vpop.f32.mrb[0].mxu0
    %v361 = vpop.f32.mrb[0].mxu0
    %v362 = vadd.f32 0.0, %v361
    %v363 = vpop.f32.mrb[0].mxu0
    %364 = vmatprep.mubr.bf16.mxu0 %v275
    %365 = vmatmul.mubr.bf16.gmra.mrb[0].mxu0 %v169
    %v366 = vpop.f32.mrb[0].mxu0
    %v367 = vadd.f32 0.0, %v366
    %v368 = vpop.f32.mrb[0].mxu0
    %v369 = vpop.f32.mrb[0].mxu0
    %v370 = vadd.f32 0.0, %v369
    %v371 = vpop.f32.mrb[0].mxu0
    %372 = vmatprep.mubr.bf16.mxu0 %v278
    %373 = vmatmul.mubr.bf16.gmra.mrb[0].mxu0 %v171
    %v374 = vpop.f32.mrb[0].mxu0
    %v375 = vadd.f32 0.0, %v374
    %v376 = vpop.f32.mrb[0].mxu0
    %v377 = vpop.f32.mrb[0].mxu0
    %v378 = vadd.f32 0.0, %v377
    %v379 = vpop.f32.mrb[0].mxu0
    %380 = vmatprep.mubr.bf16.mxu0 %v281
    %381 = vmatmul.mubr.bf16.gmra.mrb[0].mxu0 %v173
    %v382 = vpop.f32.mrb[0].mxu0
    %v383 = vadd.f32 0.0, %v382
    %v384 = vpop.f32.mrb[0].mxu0
    %v385 = vpop.f32.mrb[0].mxu0
    %v386 = vadd.f32 0.0, %v385
    %v387 = vpop.f32.mrb[0].mxu0
    %388 = vmatprep.mubr.bf16.mxu0 %v284
    %389 = vmatmul.mubr.bf16.gmra.mrb[0].mxu0 %v175
    %v390 = vpop.f32.mrb[0].mxu0
    %v391 = vadd.f32 0.0, %v390
    %v392 = vpop.f32.mrb[0].mxu0
    %v393 = vpop.f32.mrb[0].mxu0
    %v394 = vadd.f32 0.0, %v393
    %v395 = vpop.f32.mrb[0].mxu0
    %396 = vmatprep.mubr.bf16.mxu0 %v287
    %397 = vmatmul.mubr.bf16.gmra.mrb[0].mxu0 %v177
    %v398 = vpop.f32.mrb[0].mxu0
    %v399 = vadd.f32 0.0, %v398
    %v400 = vpop.f32.mrb[0].mxu0
    %v401 = vpop.f32.mrb[0].mxu0
    %v402 = vadd.f32 0.0, %v401
    %v403 = vpop.f32.mrb[0].mxu0
    %404 = vmatprep.mubr.bf16.mxu0 %v290
    %405 = vmatmul.mubr.bf16.gmra.mrb[0].mxu0 %v179
    %v406 = vpop.f32.mrb[0].mxu0
    %v407 = vadd.f32 0.0, %v406
    %v408 = vpop.f32.mrb[0].mxu0
    %v409 = vpop.f32.mrb[0].mxu0
    %v410 = vadd.f32 0.0, %v409
    %v411 = vpop.f32.mrb[0].mxu0
    %412 = vmatprep.mubr.bf16.mxu0 %v293
    %413 = vmatmul.mubr.bf16.gmra.mrb[0].mxu0 %v181
    %v414 = vpop.f32.mrb[0].mxu0
    %v415 = vadd.f32 0.0, %v414
    %v416 = vpop.f32.mrb[0].mxu0
    %v417 = vpop.f32.mrb[0].mxu0
    %v418 = vadd.f32 0.0, %v417
    %v419 = vpop.f32.mrb[0].mxu0
    %420 = vmatprep.mubr.bf16.mxu0 %v296
    %421 = vmatmul.mubr.bf16.gmra.mrb[0].mxu0 %v183
    %v422 = vpop.f32.mrb[0].mxu0
    %v423 = vadd.f32 0.0, %v422
    %v424 = vpop.f32.mrb[0].mxu0
    %v425 = vpop.f32.mrb[0].mxu0
    %v426 = vadd.f32 0.0, %v425
    %v427 = vpop.f32.mrb[0].mxu0
    %428 = vmatprep.mubr.bf16.mxu0 %v299
    %429 = vmatmul.mubr.bf16.gmra.mrb[0].mxu0 %v185
    %v430 = vpop.f32.mrb[0].mxu0
    %v431 = vadd.f32 0.0, %v430
    %v432 = vpop.f32.mrb[0].mxu0
    %v433 = vpop.f32.mrb[0].mxu0
    %v434 = vadd.f32 0.0, %v433
    %v435 = vpop.f32.mrb[0].mxu0
    %436 = vmatprep.mubr.bf16.mxu0 %v302
    %437 = vmatmul.mubr.bf16.gmra.mrb[0].mxu0 %v187
    %v438 = vpop.f32.mrb[0].mxu0
    %v439 = vadd.f32 0.0, %v438
    %v440 = vpop.f32.mrb[0].mxu0
    %v441 = vpop.f32.mrb[0].mxu0
    %v442 = vadd.f32 0.0, %v441
    %v443 = vpop.f32.mrb[0].mxu0
    %444 = vmatprep.mubr.bf16.mxu0 %v305
    %445 = vmatmul.mubr.bf16.gmra.mrb[0].mxu0 %v189
    %v446 = vpop.f32.mrb[0].mxu0
    %v447 = vadd.f32 0.0, %v446
    %v448 = vpop.f32.mrb[0].mxu0
    %v449 = vpop.f32.mrb[0].mxu0
    %v450 = vadd.f32 0.0, %v449
    %v451 = vpop.f32.mrb[0].mxu0
    %452 = vmatprep.mubr.bf16.mxu0 %v308
    %453 = vmatmul.mubr.bf16.gmra.mrb[0].mxu0 %v191
    %v454 = vpop.f32.mrb[0].mxu0
    %v455 = vadd.f32 0.0, %v454
    %v456 = vpop.f32.mrb[0].mxu0
    %v457 = vpop.f32.mrb[0].mxu0
    %v458 = vadd.f32 0.0, %v457
    %v459 = vpop.f32.mrb[0].mxu0
    %460 = vmatprep.mubr.bf16.mxu0 %v311
    %461 = vmatmul.mubr.bf16.gmra.mrb[0].mxu0 %v193
    %v462 = vpop.f32.mrb[0].mxu0
    %v463 = vadd.f32 0.0, %v462
    %v464 = vpop.f32.mrb[0].mxu0
    %v465 = vpop.f32.mrb[0].mxu0
    %v466 = vadd.f32 0.0, %v465
    %v467 = vpop.f32.mrb[0].mxu0
    %468 = vmatprep.mubr.bf16.mxu0 %v314
    %469 = vmatmul.mubr.bf16.gmra.mrb[0].mxu0 %v195
    %v470 = vpop.f32.mrb[0].mxu0
    %v471 = vadd.f32 0.0, %v470
    %v472 = vpop.f32.mrb[0].mxu0
    %v473 = vpop.f32.mrb[0].mxu0
    %v474 = vadd.f32 0.0, %v473
    %v475 = vpop.f32.mrb[0].mxu0
    %476 = vdwg.mxu0
    %v477 = vadd.f32 %v351, %v354
    %v478 = vadd.f32 %v477, %v359
    %v479 = vadd.f32 %v478, %v362
    %v480 = vadd.f32 %v479, %v367
    %v481 = vadd.f32 %v480, %v370
    %v482 = vadd.f32 %v481, %v375
    %v483 = vadd.f32 %v482, %v378
    %v484 = vadd.f32 %v483, %v383
    %v485 = vadd.f32 %v484, %v386
    %v486 = vadd.f32 %v485, %v391
    %v487 = vadd.f32 %v486, %v394
    %v488 = vadd.f32 %v487, %v399
    %v489 = vadd.f32 %v488, %v402
    %v490 = vadd.f32 %v489, %v407
    %v491 = vadd.f32 %v490, %v410
    %v492 = vadd.f32 %v491, %v415
    %v493 = vadd.f32 %v492, %v418
    %v494 = vadd.f32 %v493, %v423
    %v495 = vadd.f32 %v494, %v426
    %v496 = vadd.f32 %v495, %v431
    %v497 = vadd.f32 %v496, %v434
    %v498 = vadd.f32 %v497, %v439
    %v499 = vadd.f32 %v498, %v442
    %v500 = vadd.f32 %v499, %v447
    %v501 = vadd.f32 %v500, %v450
    %v502 = vadd.f32 %v501, %v455
    %v503 = vadd.f32 %v502, %v458
    %v504 = vadd.f32 %v503, %v463
    %v505 = vadd.f32 %v504, %v466
    %v506 = vadd.f32 %v505, %v471
    %v507 = vadd.f32 %v506, %v474
    %v508 = vrot.slane %v507, 4
    %v509 = vadd.f32 %v507, %v508
    %v510 = vrot.slane %v509, 2
    %v511 = vadd.f32 %v509, %v510
    %v512 = vrot.slane %v511, 1
    %v513 = vadd.f32 %v511, %v512
    %v514 = vmul.f32 %v513, 0.00390625
    %v515 = vmul.f32 %v351, %v351
    %v516 = vmul.f32 %v354, %v354
    %v517 = vmul.f32 %v359, %v359
    %v518 = vmul.f32 %v362, %v362
    %v519 = vmul.f32 %v367, %v367
    %v520 = vmul.f32 %v370, %v370
    %v521 = vmul.f32 %v375, %v375
    %v522 = vmul.f32 %v378, %v378
    %v523 = vmul.f32 %v383, %v383
    %v524 = vmul.f32 %v386, %v386
    %v525 = vmul.f32 %v391, %v391
    %v526 = vmul.f32 %v394, %v394
    %v527 = vmul.f32 %v399, %v399
    %v528 = vmul.f32 %v402, %v402
    %v529 = vmul.f32 %v407, %v407
    %v530 = vmul.f32 %v410, %v410
    %v531 = vmul.f32 %v415, %v415
    %v532 = vmul.f32 %v418, %v418
    %v533 = vmul.f32 %v423, %v423
    %v534 = vmul.f32 %v426, %v426
    %v535 = vmul.f32 %v431, %v431
    %v536 = vmul.f32 %v434, %v434
    %v537 = vmul.f32 %v439, %v439
    %v538 = vmul.f32 %v442, %v442
    %v539 = vmul.f32 %v447, %v447
    %v540 = vmul.f32 %v450, %v450
    %v541 = vmul.f32 %v455, %v455
    %v542 = vmul.f32 %v458, %v458
    %v543 = vmul.f32 %v463, %v463
    %v544 = vmul.f32 %v466, %v466
    %v545 = vmul.f32 %v471, %v471
    %v546 = vmul.f32 %v474, %v474
    %v547 = vadd.f32 %v515, %v516
    %v548 = vadd.f32 %v547, %v517
    %v549 = vadd.f32 %v548, %v518
    %v550 = vadd.f32 %v549, %v519
    %v551 = vadd.f32 %v550, %v520
    %v552 = vadd.f32 %v551, %v521
    %v553 = vadd.f32 %v552, %v522
    %v554 = vadd.f32 %v553, %v523
    %v555 = vadd.f32 %v554, %v524
    %v556 = vadd.f32 %v555, %v525
    %v557 = vadd.f32 %v556, %v526
    %v558 = vadd.f32 %v557, %v527
    %v559 = vadd.f32 %v558, %v528
    %v560 = vadd.f32 %v559, %v529
    %v561 = vadd.f32 %v560, %v530
    %v562 = vadd.f32 %v561, %v531
    %v563 = vadd.f32 %v562, %v532
    %v564 = vadd.f32 %v563, %v533
    %v565 = vadd.f32 %v564, %v534
    %v566 = vadd.f32 %v565, %v535
    %v567 = vadd.f32 %v566, %v536
    %v568 = vadd.f32 %v567, %v537
    %v569 = vadd.f32 %v568, %v538
    %v570 = vadd.f32 %v569, %v539
    %v571 = vadd.f32 %v570, %v540
    %v572 = vadd.f32 %v571, %v541
    %v573 = vadd.f32 %v572, %v542
    %v574 = vadd.f32 %v573, %v543
    %v575 = vadd.f32 %v574, %v544
    %v576 = vadd.f32 %v575, %v545
    %v577 = vadd.f32 %v576, %v546
    %v578 = vrot.slane %v577, 4
    %v579 = vadd.f32 %v577, %v578
    %v580 = vrot.slane %v579, 2
    %v581 = vadd.f32 %v579, %v580
    %v582 = vrot.slane %v581, 1
    %v583 = vadd.f32 %v581, %v582
    %v584 = vmul.f32 %v583, 0.00390625
    %v585 = vmul.f32 %v514, %v514
    %v586 = vsub.f32 %v584, %v585
    %v587 = vmax.f32 %v586, 0.0
    %v588 = vld [vmem:[%s2] sm:$0x1]
    %v589 = vadd.f32 %v587, 1e-05
    %v590 = vrsqrt.pop %v589
    %v591 = vmul.f32 %v588, %v590
    %v592 = vld [vmem:[%s3] sm:$0x1]
    %v593 = vmul.f32 %v514, %v591
    %v594 = vsub.f32 %v592, %v593
    %v596 = vlaneseq
    %v597 = vshrl.u32 %v596, 7
    %v598 = vsub.s32 0, %v597
    %v599 = vrot.slane %v591, %v598
    %v601 = vmul.f32 %v351, %v599
    %v602 = vmul.f32 %v354, %v599
    %v603 = vmul.f32 %v359, %v599
    %v604 = vmul.f32 %v362, %v599
    %v605 = vmul.f32 %v367, %v599
    %v606 = vmul.f32 %v370, %v599
    %v607 = vmul.f32 %v375, %v599
    %v608 = vmul.f32 %v378, %v599
    %v609 = vmul.f32 %v383, %v599
    %v610 = vmul.f32 %v386, %v599
    %v611 = vmul.f32 %v391, %v599
    %v612 = vmul.f32 %v394, %v599
    %v613 = vmul.f32 %v399, %v599
    %v614 = vmul.f32 %v402, %v599
    %v615 = vmul.f32 %v407, %v599
    %v616 = vmul.f32 %v410, %v599
    %v617 = vmul.f32 %v415, %v599
    %v618 = vmul.f32 %v418, %v599
    %v619 = vmul.f32 %v423, %v599
    %v620 = vmul.f32 %v426, %v599
    %v621 = vmul.f32 %v431, %v599
    %v622 = vmul.f32 %v434, %v599
    %v623 = vmul.f32 %v439, %v599
    %v624 = vmul.f32 %v442, %v599
    %v625 = vmul.f32 %v447, %v599
    %v626 = vmul.f32 %v450, %v599
    %v627 = vmul.f32 %v455, %v599
    %v628 = vmul.f32 %v458, %v599
    %v629 = vmul.f32 %v463, %v599
    %v630 = vmul.f32 %v466, %v599
    %v631 = vmul.f32 %v471, %v599
    %v632 = vmul.f32 %v474, %v599
    %v634 = vlaneseq
    %v635 = vshrl.u32 %v634, 7
    %v636 = vsub.s32 0, %v635
    %v637 = vrot.slane %v594, %v636
    %v639 = vadd.f32 %v601, %v637
    %v640 = vadd.f32 %v602, %v637
    %v641 = vadd.f32 %v603, %v637
    %v642 = vadd.f32 %v604, %v637
    %v643 = vadd.f32 %v605, %v637
    %v644 = vadd.f32 %v606, %v637
    %v645 = vadd.f32 %v607, %v637
    %v646 = vadd.f32 %v608, %v637
    %v647 = vadd.f32 %v609, %v637
    %v648 = vadd.f32 %v610, %v637
    %v649 = vadd.f32 %v611, %v637
    %v650 = vadd.f32 %v612, %v637
    %v651 = vadd.f32 %v613, %v637
    %v652 = vadd.f32 %v614, %v637
    %v653 = vadd.f32 %v615, %v637
    %v654 = vadd.f32 %v616, %v637
    %v655 = vadd.f32 %v617, %v637
    %v656 = vadd.f32 %v618, %v637
    %v657 = vadd.f32 %v619, %v637
    %v658 = vadd.f32 %v620, %v637
    %v659 = vadd.f32 %v621, %v637
    %v660 = vadd.f32 %v622, %v637
    %v661 = vadd.f32 %v623, %v637
    %v662 = vadd.f32 %v624, %v637
    %v663 = vadd.f32 %v625, %v637
    %v664 = vadd.f32 %v626, %v637
    %v665 = vadd.f32 %v627, %v637
    %v666 = vadd.f32 %v628, %v637
    %v667 = vadd.f32 %v629, %v637
    %v668 = vadd.f32 %v630, %v637
    %v669 = vadd.f32 %v631, %v637
    %v670 = vadd.f32 %v632, %v637
    %v671 = vpack.c.bf16 %v640, %v639
    %v672 = vpack.c.bf16 %v642, %v641
    %v673 = vpack.c.bf16 %v644, %v643
    %v674 = vpack.c.bf16 %v646, %v645
    %v675 = vpack.c.bf16 %v648, %v647
    %v676 = vpack.c.bf16 %v650, %v649
    %v677 = vpack.c.bf16 %v652, %v651
    %v678 = vpack.c.bf16 %v654, %v653
    %v679 = vpack.c.bf16 %v656, %v655
    %v680 = vpack.c.bf16 %v658, %v657
    %v681 = vpack.c.bf16 %v660, %v659
    %v682 = vpack.c.bf16 %v662, %v661
    %v683 = vpack.c.bf16 %v664, %v663
    %v684 = vpack.c.bf16 %v666, %v665
    %v685 = vpack.c.bf16 %v668, %v667
    %v686 = vpack.c.bf16 %v670, %v669
    %v703 = vunpack.c.l.b16 %v671
    %v704 = vunpack.c.h.b16 %v671
    %v705 = vunpack.c.l.b16 %v672
    %v706 = vunpack.c.h.b16 %v672
    %v707 = vunpack.c.l.b16 %v673
    %v708 = vunpack.c.h.b16 %v673
    %v709 = vunpack.c.l.b16 %v674
    %v710 = vunpack.c.h.b16 %v674
    %v711 = vunpack.c.l.b16 %v675
    %v712 = vunpack.c.h.b16 %v675
    %v713 = vunpack.c.l.b16 %v676
    %v714 = vunpack.c.h.b16 %v676
    %v715 = vunpack.c.l.b16 %v677
    %v716 = vunpack.c.h.b16 %v677
    %v717 = vunpack.c.l.b16 %v678
    %v718 = vunpack.c.h.b16 %v678
    %v719 = vunpack.c.l.b16 %v679
    %v720 = vunpack.c.h.b16 %v679
    %v721 = vunpack.c.l.b16 %v680
    %v722 = vunpack.c.h.b16 %v680
    %v723 = vunpack.c.l.b16 %v681
    %v724 = vunpack.c.h.b16 %v681
    %v725 = vunpack.c.l.b16 %v682
    %v726 = vunpack.c.h.b16 %v682
    %v727 = vunpack.c.l.b16 %v683
    %v728 = vunpack.c.h.b16 %v683
    %v729 = vunpack.c.l.b16 %v684
    %v730 = vunpack.c.h.b16 %v684
    %v731 = vunpack.c.l.b16 %v685
    %v732 = vunpack.c.h.b16 %v685
    %v733 = vunpack.c.l.b16 %v686
    %v734 = vunpack.c.h.b16 %v686
    %v735 = vpack.c.b16 %v703, %v703
    %v736 = vpack.c.b16 %v704, %v704
    %v737 = vpack.c.b16 %v705, %v705
    %v738 = vpack.c.b16 %v706, %v706
    %v739 = vpack.c.b16 %v707, %v707
    %v740 = vpack.c.b16 %v708, %v708
    %v741 = vpack.c.b16 %v709, %v709
    %v742 = vpack.c.b16 %v710, %v710
    %v743 = vpack.c.b16 %v711, %v711
    %v744 = vpack.c.b16 %v712, %v712
    %v745 = vpack.c.b16 %v713, %v713
    %v746 = vpack.c.b16 %v714, %v714
    %v747 = vpack.c.b16 %v715, %v715
    %v748 = vpack.c.b16 %v716, %v716
    %v749 = vpack.c.b16 %v717, %v717
    %v750 = vpack.c.b16 %v718, %v718
    %v751 = vpack.c.b16 %v719, %v719
    %v752 = vpack.c.b16 %v720, %v720
    %v753 = vpack.c.b16 %v721, %v721
    %v754 = vpack.c.b16 %v722, %v722
    %v755 = vpack.c.b16 %v723, %v723
    %v756 = vpack.c.b16 %v724, %v724
    %v757 = vpack.c.b16 %v725, %v725
    %v758 = vpack.c.b16 %v726, %v726
    %v759 = vpack.c.b16 %v727, %v727
    %v760 = vpack.c.b16 %v728, %v728
    %v761 = vpack.c.b16 %v729, %v729
    %v762 = vpack.c.b16 %v730, %v730
    %v763 = vpack.c.b16 %v731, %v731
    %v764 = vpack.c.b16 %v732, %v732
    %v765 = vpack.c.b16 %v733, %v733
    %v766 = vpack.c.b16 %v734, %v734
    %799 = vst [vmem:[#allocation2] sm:$0xf] %v735
    %800 = vst [vmem:[#allocation2 + $0x4] sm:$0xf] %v736
    %801 = vst [vmem:[#allocation2 + $0x8] sm:$0xf] %v737
    %802 = vst [vmem:[#allocation2 + $0xc] sm:$0xf] %v738
    %803 = vst [vmem:[#allocation2 + $0x10] sm:$0xf] %v739
    %804 = vst [vmem:[#allocation2 + $0x14] sm:$0xf] %v740
    %805 = vst [vmem:[#allocation2 + $0x18] sm:$0xf] %v741
    %806 = vst [vmem:[#allocation2 + $0x1c] sm:$0xf] %v742
    %807 = vst [vmem:[#allocation2 + $0x20] sm:$0xf] %v743
    %808 = vst [vmem:[#allocation2 + $0x24] sm:$0xf] %v744
    %809 = vst [vmem:[#allocation2 + $0x28] sm:$0xf] %v745
    %810 = vst [vmem:[#allocation2 + $0x2c] sm:$0xf] %v746
    %811 = vst [vmem:[#allocation2 + $0x30] sm:$0xf] %v747
    %812 = vst [vmem:[#allocation2 + $0x34] sm:$0xf] %v748
    %813 = vst [vmem:[#allocation2 + $0x38] sm:$0xf] %v749
    %814 = vst [vmem:[#allocation2 + $0x3c] sm:$0xf] %v750
    %815 = vst [vmem:[#allocation2 + $0x40] sm:$0xf] %v751
    %816 = vst [vmem:[#allocation2 + $0x44] sm:$0xf] %v752
    %817 = vst [vmem:[#allocation2 + $0x48] sm:$0xf] %v753
    %818 = vst [vmem:[#allocation2 + $0x4c] sm:$0xf] %v754
    %819 = vst [vmem:[#allocation2 + $0x50] sm:$0xf] %v755
    %820 = vst [vmem:[#allocation2 + $0x54] sm:$0xf] %v756
    %821 = vst [vmem:[#allocation2 + $0x58] sm:$0xf] %v757
    %822 = vst [vmem:[#allocation2 + $0x5c] sm:$0xf] %v758
    %823 = vst [vmem:[#allocation2 + $0x60] sm:$0xf] %v759
    %824 = vst [vmem:[#allocation2 + $0x64] sm:$0xf] %v760
    %825 = vst [vmem:[#allocation2 + $0x68] sm:$0xf] %v761
    %826 = vst [vmem:[#allocation2 + $0x6c] sm:$0xf] %v762
    %827 = vst [vmem:[#allocation2 + $0x70] sm:$0xf] %v763
    %828 = vst [vmem:[#allocation2 + $0x74] sm:$0xf] %v764
    %829 = vst [vmem:[#allocation2 + $0x78] sm:$0xf] %v765
    %830 = vst [vmem:[#allocation2 + $0x7c] sm:$0xf] %v766
    // Predicated region
    $region18: #{tpu_custom_call.1} parent=1 // pred_check
      _
    $region19: #{tpu_custom_call.1} parent=1 // pred_check_branch
      %832 = sbr.rel (0) target = $region21
    $region20: #{tpu_custom_call.1} parent=1 // pred_region
      %s834 = ssub.s32 2048, 2048
      %835 = vsyncadd [#allocation3], %s834
      %s836 = sshll.u32 [#allocation2], 4
      %s837 = int_to_ptr.vmem [resolvable:$true] %s836
      %842 = dma.vmem_to_hbm [thread:$0]  %s837, 2048, %s4, [#allocation3], 64, 64, 4
    $region21: #{tpu_custom_call.1} parent=1 // pred_fallthru
      _
    // Predicated region
    $region22: #{tpu_custom_call.1} parent=1 // pred_check
      _
    $region23: #{tpu_custom_call.1} parent=1 // pred_check_branch
      %844 = sbr.rel (0) target = $region25
    $region24: #{tpu_custom_call.1} parent=1 // pred_region
      %845 = dma.done [#allocation3], 2048
    $region25: #{tpu_custom_call.1} parent=1 // pred_fallthru
      _
    %846 = vsyncpa [#allocation3], 1

</llo_original>
